<compile_context>
chip_gen: v7x
topology: tpu7x:2x2x1
jax: 0.10.0
libtpu: 0.0.40
codegen_flags: <defaults>
</compile_context>

<pallas_src>
from functools import partial

import jax
import jax.numpy as jnp
import numpy as np
from jax.experimental import pallas as pl
from jax.experimental.pallas import tpu as pltpu

N_STEPS = 4


def rnn_forward_kernel(xh_ref, params_ref, out_ref):
    """One grid step = one full forward call of the PyTorch module.

    xh_ref     : (2, B, H)   plane 0 = x zero-padded to H lanes, plane 1 = hx
    params_ref : (3H+2, H)   rows [0:H)=w_ih^T (zero-padded rows),
                             [H:2H)=w_hh^T, [2H:3H)=w_fc^T (zero-padded cols),
                             row 3H = b_ih+b_hh, row 3H+1 = b_fc (zero-padded)
    out_ref    : (B, n_out)  log_softmax logits
    """
    H = params_ref.shape[1]
    n_out = out_ref.shape[-1]

    # Static slices of the packed parameter block (single DMA'd operand).
    w_ih = params_ref[0:H, :]                # (H, H), rows >= n_inputs are zero
    w_hh = params_ref[H:2 * H, :]            # (H, H)
    w_fc = params_ref[2 * H:3 * H, :]        # (H, H), cols >= n_out are zero
    bias = params_ref[3 * H:3 * H + 2, :]    # (2, H)
    b_rnn = bias[0:1, :]                     # (1, H) = b_ih + b_hh
    b_fc = bias[1:2, :]                      # (1, H), zero past n_out

    x = xh_ref[0]                            # (B, H), zero-padded past n_inputs
    hx = xh_ref[1]                           # (B, H)

    # Loop-invariant input projection + folded RNN biases: computed exactly once.
    xw = jnp.dot(x, w_ih, preferred_element_type=jnp.float32) + b_rnn

    # 4 serial recurrent steps; only the hidden-state recurrence stays inside.
    for _ in range(N_STEPS):
        pre = xw + jnp.dot(hx, w_hh, preferred_element_type=jnp.float32)
        hx = jnp.maximum(jnp.tanh(pre), 0.0)         # relu(tanh(.)) as in PyTorch

    # FC + bias + log_softmax once, on the final hidden state only.
    logits = jnp.dot(hx, w_fc, preferred_element_type=jnp.float32) + b_fc  # (B, H)
    logits = logits[:, :n_out]        # drop zero-padded columns BEFORE max/logsumexp
    m = jnp.max(logits, axis=1, keepdims=True)
    shifted = logits - m
    lse = jnp.log(jnp.sum(jnp.exp(shifted), axis=1, keepdims=True))
    out_ref[...] = (shifted - lse).astype(out_ref.dtype)


def prepare_params(w_ih, w_hh, b_ih, b_hh, w_fc, b_fc):
    """One-time preprocessing: transpose + fold + pack everything into one block."""
    H = w_hh.shape[0]
    n_inputs = w_ih.shape[1]
    n_out = w_fc.shape[0]
    assert n_inputs <= H and n_out <= H, "packing assumes n_inputs, n_out <= n_neurons"

    P = 3 * H + 2
    params = jnp.zeros((P, H), jnp.float32)
    params = params.at[:n_inputs, :].set(jnp.asarray(w_ih, jnp.float32).T)        # w_ih^T
    params = params.at[H:2 * H, :].set(jnp.asarray(w_hh, jnp.float32).T)          # w_hh^T
    params = params.at[2 * H:3 * H, :n_out].set(jnp.asarray(w_fc, jnp.float32).T)  # w_fc^T
    params = params.at[3 * H, :].set(
        jnp.asarray(b_ih, jnp.float32) + jnp.asarray(b_hh, jnp.float32))          # folded bias
    params = params.at[3 * H + 1, :n_out].set(jnp.asarray(b_fc, jnp.float32))     # b_fc padded
    return params


@partial(jax.jit, static_argnames=("n_out",))
def rnn_forward(x, hx, params, n_out=6):
    """N independent forward calls folded into one launch (grid=(N,)).

    x  : (N, B, n_inputs) or (B, n_inputs)
    hx : (N, B, H)        or (B, H)
    """
    squeeze = x.ndim == 2
    if squeeze:
        x = x[None]
        hx = hx[None]
    n_calls, batch, n_inputs = x.shape
    H = hx.shape[-1]
    P = params.shape[0]
    assert n_inputs <= H, "packing assumes n_inputs <= n_neurons"

    # Pack (zero-padded x, hx) into a single per-call operand -> 1 input DMA/step.
    x_pad = jnp.zeros((n_calls, batch, H), jnp.float32).at[..., :n_inputs].set(
        x.astype(jnp.float32))
    xh = jnp.stack([x_pad, hx.astype(jnp.float32)], axis=1)   # (N, 2, B, H)

    flops = n_calls * 2 * batch * H * H * (N_STEPS + 2)
    transcendentals = n_calls * (N_STEPS * batch * H + batch * n_out)
    bytes_accessed = 4 * (xh.size + n_calls * batch * n_out + params.size)

    out = pl.pallas_call(
        rnn_forward_kernel,
        out_shape=jax.ShapeDtypeStruct((n_calls, batch, n_out), jnp.float32),
        grid=(n_calls,),
        in_specs=[
            # one packed (x | hx) block per grid step
            pl.BlockSpec((None, 2, batch, H), lambda i: (i, 0, 0, 0)),
            # constant index_map: packed parameters stay VMEM-resident across the grid
            pl.BlockSpec((P, H), lambda i: (0, 0)),
        ],
        out_specs=pl.BlockSpec((None, batch, n_out), lambda i: (i, 0, 0)),
        compiler_params=pltpu.CompilerParams(
            dimension_semantics=("parallel",)),  # v7x: shard grid across both TCs
        cost_estimate=pl.CostEstimate(
            flops=flops,
            transcendentals=transcendentals,
            bytes_accessed=bytes_accessed),
    )(xh, params)
    return out[0] if squeeze else out
    # TODO(synk): on v5e, casting packed weights/hx to bf16 (keeping
    # preferred_element_type=f32) would cut MXU passes on the serial recurrence,
    # but exceeds the 1e-5 tolerance against the f32 reference, so it is not done.


def rnn_forward_ref(x, hx, w_ih, w_hh, b_ih, b_hh, w_fc, b_fc):
    """Pure-JAX reference matching the PyTorch module exactly."""
    out = None
    for _ in range(N_STEPS):
        pre = x @ w_ih.T + b_ih + hx @ w_hh.T + b_hh
        hx = jnp.maximum(jnp.tanh(pre), 0.0)
        out = hx @ w_fc.T + b_fc
    return jax.nn.log_softmax(out, axis=1)


if __name__ == "__main__":
    # Small shapes consistent with the module's __init__/forward.
    batch, n_inputs, n_neurons, n_classes = 4, 16, 32, 6
    n_calls = 8   # independent forward calls folded into one launch (grid axis)

    key = jax.random.PRNGKey(0)
    keys = jax.random.split(key, 8)

    x = jax.random.normal(keys[0], (n_calls, batch, n_inputs), jnp.float32)
    hx = jax.random.normal(keys[1], (n_calls, batch, n_neurons), jnp.float32)   # self.hx
    w_ih = jax.random.normal(keys[2], (n_neurons, n_inputs), jnp.float32) * 0.1
    w_hh = jax.random.normal(keys[3], (n_neurons, n_neurons), jnp.float32) * 0.1
    b_ih = jax.random.normal(keys[4], (n_neurons,), jnp.float32) * 0.1
    b_hh = jax.random.normal(keys[5], (n_neurons,), jnp.float32) * 0.1
    w_fc = jax.random.normal(keys[6], (n_classes, n_neurons), jnp.float32) * 0.1
    b_fc = jax.random.normal(keys[7], (n_classes,), jnp.float32) * 0.1

    # One-time preprocessing: single packed (3H+2, H) parameter block.
    params_packed = prepare_params(w_ih, w_hh, b_ih, b_hh, w_fc, b_fc)

    # Batched path: n_calls forwards in one pallas_call (weights VMEM-resident).
    out = rnn_forward(x, hx, params_packed, n_out=n_classes)
    out = jax.block_until_ready(out)

    ref = jax.vmap(
        lambda xi, hi: rnn_forward_ref(xi, hi, w_ih, w_hh, b_ih, b_hh, w_fc, b_fc)
    )(x, hx)
    assert out.shape == (n_calls, batch, n_classes)
    assert np.allclose(np.asarray(out), np.asarray(ref), atol=1e-5, rtol=1e-5)

    # Single-call path (matches the module's forward signature exactly).
    out1 = rnn_forward(x[0], hx[0], params_packed, n_out=n_classes)
    out1 = jax.block_until_ready(out1)
    assert out1.shape == (batch, n_classes)
    assert np.allclose(np.asarray(out1), np.asarray(ref[0]), atol=1e-5, rtol=1e-5)

    print("KERNEL_OK")
</pallas_src>

<mosaic_0001>
module attributes {stable_mosaic.version = 11 : i64} {
  func.func @rnn_forward_kernel(%arg0: i32, %arg1: memref<1x2x4x32xf32, #tpu.memory_space<vmem>>, %arg2: memref<98x32xf32, #tpu.memory_space<vmem>>, %arg3: memref<1x4x6xf32, #tpu.memory_space<vmem>>) attributes {dimension_semantics = [#tpu.dimension_semantics<parallel>], iteration_bounds = array<i64: 8>, scalar_prefetch = 0 : i64, scratch_operands = 0 : i64, tpu.core_type = #tpu.core_type<tc>, window_params = [{transform_indices = @transform_0, window_bounds = array<i64: 1, 2, 4, 32>}, {pipeline_mode = #tpu.pipeline_mode<synchronous>, transform_indices = @transform_1, window_bounds = array<i64: 98, 32>}, {transform_indices = @transform_2, window_bounds = array<i64: 1, 4, 6>}]} {
    %c0 = arith.constant 0 : index
    %c0_0 = arith.constant 0 : index
    %0 = vector.load %arg2[%c0, %c0_0] : memref<98x32xf32, #tpu.memory_space<vmem>>, vector<32x32xf32>
    %c32 = arith.constant 32 : index
    %c0_1 = arith.constant 0 : index
    %1 = vector.load %arg2[%c32, %c0_1] : memref<98x32xf32, #tpu.memory_space<vmem>>, vector<32x32xf32>
    %c64 = arith.constant 64 : index
    %c0_2 = arith.constant 0 : index
    %2 = vector.load %arg2[%c64, %c0_2] : memref<98x32xf32, #tpu.memory_space<vmem>>, vector<32x32xf32>
    %c96 = arith.constant 96 : index
    %c0_3 = arith.constant 0 : index
    %3 = vector.load %arg2[%c96, %c0_3] : memref<98x32xf32, #tpu.memory_space<vmem>>, vector<2x32xf32>
    %4 = vector.extract_strided_slice %3 {offsets = [0, 0], sizes = [1, 32], strides = [1, 1]} : vector<2x32xf32> to vector<1x32xf32>
    %5 = vector.extract_strided_slice %3 {offsets = [1, 0], sizes = [1, 32], strides = [1, 1]} : vector<2x32xf32> to vector<1x32xf32>
    %c0_4 = arith.constant 0 : index
    %c0_5 = arith.constant 0 : index
    %c0_6 = arith.constant 0 : index
    %c0_7 = arith.constant 0 : index
    %6 = vector.load %arg1[%c0_4, %c0_5, %c0_6, %c0_7] : memref<1x2x4x32xf32, #tpu.memory_space<vmem>>, vector<1x1x4x32xf32>
    %7 = vector.shape_cast %6 : vector<1x1x4x32xf32> to vector<4x32xf32>
    %c0_8 = arith.constant 0 : index
    %c1 = arith.constant 1 : index
    %c0_9 = arith.constant 0 : index
    %c0_10 = arith.constant 0 : index
    %8 = vector.load %arg1[%c0_8, %c1, %c0_9, %c0_10] : memref<1x2x4x32xf32, #tpu.memory_space<vmem>>, vector<1x1x4x32xf32>
    %9 = vector.shape_cast %8 : vector<1x1x4x32xf32> to vector<4x32xf32>
    %cst = arith.constant dense<0.000000e+00> : vector<4x32xf32>
    %10 = tpu.matmul %7, %0, %cst {dimension_numbers = #tpu.dot_dimension_numbers<[1], [0], [0], [1], [0, 0, 1, 1], [], []>} : vector<4x32xf32>, vector<32x32xf32>, vector<4x32xf32> -> vector<4x32xf32>
    %11 = vector.broadcast %4 : vector<1x32xf32> to vector<4x32xf32>
    %12 = arith.addf %10, %11 : vector<4x32xf32>
    %cst_11 = arith.constant dense<0.000000e+00> : vector<4x32xf32>
    %13 = tpu.matmul %9, %1, %cst_11 {dimension_numbers = #tpu.dot_dimension_numbers<[1], [0], [0], [1], [0, 0, 1, 1], [], []>} : vector<4x32xf32>, vector<32x32xf32>, vector<4x32xf32> -> vector<4x32xf32>
    %14 = arith.addf %12, %13 : vector<4x32xf32>
    %15 = math.tanh %14 : vector<4x32xf32>
    %cst_12 = arith.constant 0.000000e+00 : f32
    %16 = vector.broadcast %cst_12 : f32 to vector<4x32xf32>
    %17 = arith.maximumf %15, %16 : vector<4x32xf32>
    %cst_13 = arith.constant dense<0.000000e+00> : vector<4x32xf32>
    %18 = tpu.matmul %17, %1, %cst_13 {dimension_numbers = #tpu.dot_dimension_numbers<[1], [0], [0], [1], [0, 0, 1, 1], [], []>} : vector<4x32xf32>, vector<32x32xf32>, vector<4x32xf32> -> vector<4x32xf32>
    %19 = arith.addf %12, %18 : vector<4x32xf32>
    %20 = math.tanh %19 : vector<4x32xf32>
    %cst_14 = arith.constant 0.000000e+00 : f32
    %21 = vector.broadcast %cst_14 : f32 to vector<4x32xf32>
    %22 = arith.maximumf %20, %21 : vector<4x32xf32>
    %cst_15 = arith.constant dense<0.000000e+00> : vector<4x32xf32>
    %23 = tpu.matmul %22, %1, %cst_15 {dimension_numbers = #tpu.dot_dimension_numbers<[1], [0], [0], [1], [0, 0, 1, 1], [], []>} : vector<4x32xf32>, vector<32x32xf32>, vector<4x32xf32> -> vector<4x32xf32>
    %24 = arith.addf %12, %23 : vector<4x32xf32>
    %25 = math.tanh %24 : vector<4x32xf32>
    %cst_16 = arith.constant 0.000000e+00 : f32
    %26 = vector.broadcast %cst_16 : f32 to vector<4x32xf32>
    %27 = arith.maximumf %25, %26 : vector<4x32xf32>
    %cst_17 = arith.constant dense<0.000000e+00> : vector<4x32xf32>
    %28 = tpu.matmul %27, %1, %cst_17 {dimension_numbers = #tpu.dot_dimension_numbers<[1], [0], [0], [1], [0, 0, 1, 1], [], []>} : vector<4x32xf32>, vector<32x32xf32>, vector<4x32xf32> -> vector<4x32xf32>
    %29 = arith.addf %12, %28 : vector<4x32xf32>
    %30 = math.tanh %29 : vector<4x32xf32>
    %cst_18 = arith.constant 0.000000e+00 : f32
    %31 = vector.broadcast %cst_18 : f32 to vector<4x32xf32>
    %32 = arith.maximumf %30, %31 : vector<4x32xf32>
    %cst_19 = arith.constant dense<0.000000e+00> : vector<4x32xf32>
    %33 = tpu.matmul %32, %2, %cst_19 {dimension_numbers = #tpu.dot_dimension_numbers<[1], [0], [0], [1], [0, 0, 1, 1], [], []>} : vector<4x32xf32>, vector<32x32xf32>, vector<4x32xf32> -> vector<4x32xf32>
    %34 = vector.broadcast %5 : vector<1x32xf32> to vector<4x32xf32>
    %35 = arith.addf %33, %34 : vector<4x32xf32>
    %36 = vector.extract_strided_slice %35 {offsets = [0, 0], sizes = [4, 6], strides = [1, 1]} : vector<4x32xf32> to vector<4x6xf32>
    %cst_20 = arith.constant dense<0xFF800000> : vector<4xf32>
    %37 = vector.multi_reduction <maximumf>, %36, %cst_20 [1] : vector<4x6xf32> to vector<4xf32>
    %38 = vector.shape_cast %37 : vector<4xf32> to vector<4x1xf32>
    %39 = vector.broadcast %38 : vector<4x1xf32> to vector<4x6xf32>
    %40 = arith.subf %36, %39 : vector<4x6xf32>
    %41 = math.exp %40 : vector<4x6xf32>
    %cst_21 = arith.constant dense<0.000000e+00> : vector<4xf32>
    %42 = vector.multi_reduction <add>, %41, %cst_21 [1] : vector<4x6xf32> to vector<4xf32>
    %43 = vector.shape_cast %42 : vector<4xf32> to vector<4x1xf32>
    %44 = math.log %43 : vector<4x1xf32>
    %45 = vector.broadcast %44 : vector<4x1xf32> to vector<4x6xf32>
    %46 = arith.subf %40, %45 : vector<4x6xf32>
    %c0_22 = arith.constant 0 : index
    %c0_23 = arith.constant 0 : index
    %c0_24 = arith.constant 0 : index
    %47 = vector.load %arg3[%c0_22, %c0_23, %c0_24] : memref<1x4x6xf32, #tpu.memory_space<vmem>>, vector<1x4x6xf32>
    %48 = vector.shape_cast %47 : vector<1x4x6xf32> to vector<4x6xf32>
    %49 = vector.shape_cast %46 : vector<4x6xf32> to vector<1x4x6xf32>
    tpu.vector_store %arg3[%c0_22, %c0_23, %c0_24], %49 {strides = array<i32>} : memref<1x4x6xf32, #tpu.memory_space<vmem>>, vector<1x4x6xf32>,
    return
  }
  func.func @transform_0(%arg0: i32) -> (i32, i32, i32, i32) {
    %c0_i32 = arith.constant 0 : i32
    %c0_i32_0 = arith.constant 0 : i32
    %c0_i32_1 = arith.constant 0 : i32
    %c0_i32_2 = arith.constant 0 : i32
    return %arg0, %c0_i32, %c0_i32_0, %c0_i32_1 : i32, i32, i32, i32
  }
  func.func @transform_1(%arg0: i32) -> (i32, i32) {
    %c0_i32 = arith.constant 0 : i32
    %c0_i32_0 = arith.constant 0 : i32
    %c0_i32_1 = arith.constant 0 : i32
    return %c0_i32, %c0_i32_0 : i32, i32
  }
  func.func @transform_2(%arg0: i32) -> (i32, i32, i32) {
    %c0_i32 = arith.constant 0 : i32
    %c0_i32_0 = arith.constant 0 : i32
    %c0_i32_1 = arith.constant 0 : i32
    return %arg0, %c0_i32, %c0_i32_0 : i32, i32, i32
  }
}

</mosaic_0001>

<llo_original>
// kernel: rnn_forward.1
$region0: #{rnn_forward.1}
  #allocation0 [shape = 'u32[]', space=smem, size = 0x4, offset = 0x4, fixed_abs, tag = 'smem constant byte address 0x4 - core index']
  #allocation1 [shape = 'u32[144,128]{1,0:T(1,128)}', space=vmem, size = 0x12000, scoped, tag = 'internal scratch']
  %s0 = inlined_call_operand.vmem [shape: f32[8,2,4,32], index: 0, kind: input, shape index: {}]
  %s1 = inlined_call_operand.vmem [shape: f32[98,32], index: 1, kind: input, shape index: {}]
  %s2 = inlined_call_operand.vmem [shape: f32[8,4,6], index: 2, kind: output, shape index: {}]
  %s3 = sld [smem:[#allocation0]]
  $region41: #{rnn_forward.1} parent=0
    _
  %s5 = ssub.s32 1, %s3
  %s6 = scalar_select 0, %s5, %s3
  loop: start=0, step=1, limit=10
  $region2: #{rnn_forward.1} parent=0 // loop_pre_header
    _
  $region3: #{rnn_forward.1} parent=0 // loop_header
    %s8 = sphi 0, %s12
    %p9 = scmp.ge.s32.totalorder %s8, 10
    %s18 = sphi 0, %s20
    %s21 = sphi 0, %s18
    %s22 = sphi 0, %s21
    %s38 = sphi 0, %s22
    %s42 = sphi 0, %s42
    %s44 = sphi 0, %s42
    %s45 = sphi 0, %s44
    %s59 = sphi 0, %s45
    %s65 = sphi 0, %s67
    %s68 = sphi 0, %s65
    %s69 = sphi 0, %s68
    %s85 = sphi 0, %s69
  $region4: #{rnn_forward.1} parent=0 // loop_header_branch
    %11 = sbr.rel (%p9) target = $region8
  $region5: #{rnn_forward.1} parent=0 // loop_body
    %s13 = ssub.s32 %s8, 1
    %s14 = ssub.s32 %s8, 2
    %s15 = sadd.s32 %s8, 1
    %s16 = ssub.s32 %s8, %s15
    %p17 = scmp.eq.s32.totalorder %s16, 0
    %s19 = sadd.s32 %s18, 1
    %s20 = scalar_select %p17, %s18, %s19
    %p23 = pneg %p17
    %p24 = scmp.eq.s32.totalorder %s8, 7
    %p25 = por %p23, %p24
    %p26 = scmp.ne.s32.totalorder %s18, %s21
    %p27 = scmp.eq.s32.totalorder %s8, 0
    %p28 = por %p26, %p27
    %p29 = scmp.ne.s32.totalorder %s18, %s21
    %p30 = scmp.eq.s32.totalorder %s13, 7
    %p31 = por %p29, %p30
    %p32 = scmp.ne.s32.totalorder %s21, %s22
    %p33 = scmp.eq.s32.totalorder %s13, 0
    %p34 = por %p32, %p33
    %p35 = scmp.ne.s32.totalorder %s21, %s22
    %p36 = scmp.eq.s32.totalorder %s14, 7
    %p37 = por %p35, %p36
    %p39 = scmp.ne.s32.totalorder %s22, %s38
    %p40 = scmp.eq.s32.totalorder %s14, 0
    %p41 = por %p39, %p40
    %s43 = sadd.s32 %s42, 1
    %p46 = scmp.eq.s32.totalorder %s8, 7
    %p47 = scmp.ne.s32.totalorder %s42, %s44
    %p48 = scmp.eq.s32.totalorder %s8, 0
    %p49 = por %p47, %p48
    %p50 = scmp.ne.s32.totalorder %s42, %s44
    %p51 = scmp.eq.s32.totalorder %s13, 7
    %p52 = por %p50, %p51
    %p53 = scmp.ne.s32.totalorder %s44, %s45
    %p54 = scmp.eq.s32.totalorder %s13, 0
    %p55 = por %p53, %p54
    %p56 = scmp.ne.s32.totalorder %s44, %s45
    %p57 = scmp.eq.s32.totalorder %s14, 7
    %p58 = por %p56, %p57
    %p60 = scmp.ne.s32.totalorder %s45, %s59
    %p61 = scmp.eq.s32.totalorder %s14, 0
    %p62 = por %p60, %p61
    %s63 = ssub.s32 %s8, %s15
    %p64 = scmp.eq.s32.totalorder %s63, 0
    %s66 = sadd.s32 %s65, 1
    %s67 = scalar_select %p64, %s65, %s66
    %p70 = pneg %p64
    %p71 = scmp.eq.s32.totalorder %s8, 7
    %p72 = por %p70, %p71
    %p73 = scmp.ne.s32.totalorder %s65, %s68
    %p74 = scmp.eq.s32.totalorder %s8, 0
    %p75 = por %p73, %p74
    %p76 = scmp.ne.s32.totalorder %s65, %s68
    %p77 = scmp.eq.s32.totalorder %s13, 7
    %p78 = por %p76, %p77
    %p79 = scmp.ne.s32.totalorder %s68, %s69
    %p80 = scmp.eq.s32.totalorder %s13, 0
    %p81 = por %p79, %p80
    %p82 = scmp.ne.s32.totalorder %s68, %s69
    %p83 = scmp.eq.s32.totalorder %s14, 7
    %p84 = por %p82, %p83
    %p86 = scmp.ne.s32.totalorder %s69, %s85
    %p87 = scmp.eq.s32.totalorder %s14, 0
    %p88 = por %p86, %p87
    %p89 = scmp.le.s32.totalorder 1, %s8
    %p90 = scmp.lt.s32.totalorder %s8, 9
    %p91 = pnand %p89, %p90
    %p92 = pneg %p91
    // Predicated region
    $region9: #{rnn_forward.1} parent=5 // pred_check
      _
    $region10: #{rnn_forward.1} parent=5 // pred_check_branch
      %94 = sbr.rel (%p91) target = $region12
    $region11: #{rnn_forward.1} parent=5 // pred_region
      %s95 = ssub.s32 %s8, 1
      // Predicated region
      $region13: #{rnn_forward.1} parent=11 // pred_check
        %p96 = pneg %p55
      $region14: #{rnn_forward.1} parent=11 // pred_check_branch
        %98 = sbr.rel (%p96) target = $region16
      $region15: #{rnn_forward.1} parent=11 // pred_region
        _
      $region16: #{rnn_forward.1} parent=11 // pred_fallthru
        _
    $region12: #{rnn_forward.1} parent=5 // pred_fallthru
      _
    %p99 = scmp.lt.s32.totalorder %s8, 8
    // Predicated region
    $region17: #{rnn_forward.1} parent=5 // pred_check
      %p100 = pneg %p99
    $region18: #{rnn_forward.1} parent=5 // pred_check_branch
      %102 = sbr.rel (%p100) target = $region20
    $region19: #{rnn_forward.1} parent=5 // pred_region
      // Predicated region
      $region21: #{rnn_forward.1} parent=19 // pred_check
        %p103 = pneg %p28
      $region22: #{rnn_forward.1} parent=19 // pred_check_branch
        %105 = sbr.rel (%p103) target = $region24
      $region23: #{rnn_forward.1} parent=19 // pred_region
        %p106 = scmp.lt.s32.totalorder %s8, 7
        %s107 = scalar_select %p106, %s8, 7
        %s108 = smul.addr %s107, 2
        %s109 = smul.addr %s108, 4
        %s110 = scalar_lea.vmem %s0, %s109
      $region24: #{rnn_forward.1} parent=19 // pred_fallthru
        _
    $region20: #{rnn_forward.1} parent=5 // pred_fallthru
      _
    %p111 = scmp.le.s32.totalorder 1, %s8
    %p112 = scmp.lt.s32.totalorder %s8, 9
    %p113 = pnand %p111, %p112
    %p114 = pneg %p113
    // Predicated region
    $region25: #{rnn_forward.1} parent=5 // pred_check
      _
    $region26: #{rnn_forward.1} parent=5 // pred_check_branch
      %116 = sbr.rel (%p113) target = $region28
    $region27: #{rnn_forward.1} parent=5 // pred_region
      %s117 = ssub.s32 %s8, 1
      %p118 = scmp.lt.s32.totalorder %s13, 7
      %s119 = scalar_select %p118, %s13, 7
      %s120 = smul.addr %s119, 2
      %s121 = smul.addr %s120, 4
      %s122 = scalar_lea.vmem %s0, %s121
      %p123 = pneg %p34
      %p124 = pneg %p31
      %p125 = pneg %p55
      %p126 = pneg %p52
      %p127 = pneg %p81
      %p128 = pneg %p78
      %p129 = scmp.lt.s32.totalorder %s13, 7
      %s130 = scalar_select %p129, %s13, 7
      %s131 = smul.addr %s130, 4
      %s132 = scalar_lea.vmem %s2, %s131
      %p133 = scmp.lt.s32.totalorder %s13, 7
      %s134 = scalar_select %p133, %s13, 7
      %s135 = smul.addr %s134, 2
      %s136 = smul.addr %s135, 4
      %s137 = scalar_lea.vmem %s0, %s136
      %p138 = scmp.lt.s32.totalorder %s13, 7
      %s139 = scalar_select %p138, %s13, 7
      %s140 = smul.addr %s139, 4
      %s141 = scalar_lea.vmem %s2, %s140
      %v142 = vld [vmem:[%s1] sm:$0xff]
      %v143 = vld [vmem:[%s1 + $0x8] sm:$0xff]
      %v144 = vld [vmem:[%s1 + $0x10] sm:$0xff]
      %v145 = vld [vmem:[%s1 + $0x18] sm:$0xff]
      %v146 = vld [vmem:[%s1 + $0x20] sm:$0xff]
      %v147 = vld [vmem:[%s1 + $0x28] sm:$0xff]
      %v148 = vld [vmem:[%s1 + $0x30] sm:$0xff]
      %v149 = vld [vmem:[%s1 + $0x38] sm:$0xff]
      %v150 = vld [vmem:[%s1 + $0x40] sm:$0xff]
      %v151 = vld [vmem:[%s1 + $0x48] sm:$0xff]
      %v152 = vld [vmem:[%s1 + $0x50] sm:$0xff]
      %v153 = vld [vmem:[%s1 + $0x58] sm:$0xff]
      %v154 = vld [vmem:[%s1 + $0x60] sm:$0x3]
      %v155 = vld [vmem:[%s137] sm:$0xf]
      %s156 = scalar_lea.vmem %s137, 4
      %v157 = vld [vmem:[%s156] sm:$0xf]
      %v158 = vlaneseq
      %v159 = vshrl.u32 %v158, 7
      %v160 = vsub.s32 0, %v159
      %v161 = vrot.slane %v154, %v160
      %vm162 = vcmask 261120
      %v164 = vsel %vm162, %v155, 0
      %166 = vmatprep.subr.mxu0 0.0
      %167 = vmatpush1.msra.mxu0 %v142
      %168 = vmatprep.subr.mxu0 0.0
      %169 = vmatpush1.msra.mxu0 %v143
      %170 = vmatprep.subr.mxu0 0.0
      %171 = vmatpush1.msra.mxu0 %v144
      %172 = vmatprep.subr.mxu0 0.0
      %173 = vmatpush1.msra.mxu0 %v145
      %174 = vmatprep.subr.mxu0 0.0
      %175 = vmatpush1.msra.mxu0 0.0
      %176 = vmatprep.subr.mxu0 0.0
      %177 = vmatpush1.msra.mxu0 0.0
      %178 = vmatprep.subr.mxu0 0.0
      %179 = vmatpush1.msra.mxu0 0.0
      %180 = vmatprep.subr.mxu0 0.0
      %181 = vmatpush1.msra.mxu0 0.0
      %182 = vmatprep.subr.mxu0 0.0
      %183 = vmatpush1.msra.mxu0 0.0
      %184 = vmatprep.subr.mxu0 0.0
      %185 = vmatpush1.msra.mxu0 0.0
      %186 = vmatprep.subr.mxu0 0.0
      %187 = vmatpush1.msra.mxu0 0.0
      %188 = vmatprep.subr.mxu0 0.0
      %189 = vmatpush1.msra.mxu0 0.0
      %190 = vmatprep.subr.mxu0 0.0
      %191 = vmatpush1.msra.mxu0 0.0
      %192 = vmatprep.subr.mxu0 0.0
      %193 = vmatpush1.msra.mxu0 0.0
      %194 = vmatprep.subr.mxu0 0.0
      %195 = vmatpush1.msra.mxu0 0.0
      %196 = vmatprep.subr.mxu0 0.0
      %197 = vmatpush1.msra.mxu0 0.0
      %198 = vmatprep.subr.mxu0 0.0
      %199 = vmatpush1.msra.mxu0 0.0
      %200 = vmatprep.subr.mxu0 0.0
      %201 = vmatpush1.msra.mxu0 0.0
      %202 = vmatprep.subr.mxu0 0.0
      %203 = vmatpush1.msra.mxu0 0.0
      %204 = vmatprep.subr.mxu0 0.0
      %205 = vmatpush1.msra.mxu0 0.0
      %206 = vmatprep.subr.mxu0 0.0
      %207 = vmatpush1.msra.mxu0 0.0
      %208 = vmatprep.subr.mxu0 0.0
      %209 = vmatpush1.msra.mxu0 0.0
      %210 = vmatprep.subr.mxu0 0.0
      %211 = vmatpush1.msra.mxu0 0.0
      %212 = vmatprep.subr.mxu0 0.0
      %213 = vmatpush1.msra.mxu0 0.0
      %214 = vmatprep.subr.mxu0 0.0
      %215 = vmatpush1.msra.mxu0 0.0
      %216 = vmatprep.subr.mxu0 0.0
      %217 = vmatpush1.msra.mxu0 0.0
      %218 = vmatprep.subr.mxu0 0.0
      %219 = vmatpush1.msra.mxu0 0.0
      %220 = vmatprep.subr.mxu0 0.0
      %221 = vmatpush1.msra.mxu0 0.0
      %222 = vmatprep.subr.mxu0 0.0
      %223 = vmatpush1.msra.mxu0 0.0
      %224 = vmatprep.subr.mxu0 0.0
      %225 = vmatpush1.msra.mxu0 0.0
      %226 = vmatprep.subr.mxu0 0.0
      %227 = vmatpush1.msra.mxu0 0.0
      %228 = vmatprep.subr.mxu0 0.0
      %229 = vmatpush1.msra.mxu0 0.0
      %230 = vmatprep.mubr.f32.mxu0 0.0
      %231 = vmatmul.mubr.f32.gmra.mrb[0].mxu0 %v164
      %v232 = vpop.f32.mrb[0].mxu0
      %v233 = vadd.f32 %v161, %v232
      %v234 = vpop.f32.mrb[0].mxu0
      %235 = vdwg.mxu0
      %v237 = vsel %vm162, %v157, 0
      %239 = vmatprep.subr.mxu0 0.0
      %240 = vmatpush1.msra.mxu0 %v146
      %241 = vmatprep.subr.mxu0 0.0
      %242 = vmatpush1.msra.mxu0 %v147
      %243 = vmatprep.subr.mxu0 0.0
      %244 = vmatpush1.msra.mxu0 %v148
      %245 = vmatprep.subr.mxu0 0.0
      %246 = vmatpush1.msra.mxu0 %v149
      %247 = vmatprep.subr.mxu0 0.0
      %248 = vmatpush1.msra.mxu0 0.0
      %249 = vmatprep.subr.mxu0 0.0
      %250 = vmatpush1.msra.mxu0 0.0
      %251 = vmatprep.subr.mxu0 0.0
      %252 = vmatpush1.msra.mxu0 0.0
      %253 = vmatprep.subr.mxu0 0.0
      %254 = vmatpush1.msra.mxu0 0.0
      %255 = vmatprep.subr.mxu0 0.0
      %256 = vmatpush1.msra.mxu0 0.0
      %257 = vmatprep.subr.mxu0 0.0
      %258 = vmatpush1.msra.mxu0 0.0
      %259 = vmatprep.subr.mxu0 0.0
      %260 = vmatpush1.msra.mxu0 0.0
      %261 = vmatprep.subr.mxu0 0.0
      %262 = vmatpush1.msra.mxu0 0.0
      %263 = vmatprep.subr.mxu0 0.0
      %264 = vmatpush1.msra.mxu0 0.0
      %265 = vmatprep.subr.mxu0 0.0
      %266 = vmatpush1.msra.mxu0 0.0
      %267 = vmatprep.subr.mxu0 0.0
      %268 = vmatpush1.msra.mxu0 0.0
      %269 = vmatprep.subr.mxu0 0.0
      %270 = vmatpush1.msra.mxu0 0.0
      %271 = vmatprep.subr.mxu0 0.0
      %272 = vmatpush1.msra.mxu0 0.0
      %273 = vmatprep.subr.mxu0 0.0
      %274 = vmatpush1.msra.mxu0 0.0
      %275 = vmatprep.subr.mxu0 0.0
      %276 = vmatpush1.msra.mxu0 0.0
      %277 = vmatprep.subr.mxu0 0.0
      %278 = vmatpush1.msra.mxu0 0.0
      %279 = vmatprep.subr.mxu0 0.0
      %280 = vmatpush1.msra.mxu0 0.0
      %281 = vmatprep.subr.mxu0 0.0
      %282 = vmatpush1.msra.mxu0 0.0
      %283 = vmatprep.subr.mxu0 0.0
      %284 = vmatpush1.msra.mxu0 0.0
      %285 = vmatprep.subr.mxu0 0.0
      %286 = vmatpush1.msra.mxu0 0.0
      %287 = vmatprep.subr.mxu0 0.0
      %288 = vmatpush1.msra.mxu0 0.0
      %289 = vmatprep.subr.mxu0 0.0
      %290 = vmatpush1.msra.mxu0 0.0
      %291 = vmatprep.subr.mxu0 0.0
      %292 = vmatpush1.msra.mxu0 0.0
      %293 = vmatprep.subr.mxu0 0.0
      %294 = vmatpush1.msra.mxu0 0.0
      %295 = vmatprep.subr.mxu0 0.0
      %296 = vmatpush1.msra.mxu0 0.0
      %297 = vmatprep.subr.mxu0 0.0
      %298 = vmatpush1.msra.mxu0 0.0
      %299 = vmatprep.subr.mxu0 0.0
      %300 = vmatpush1.msra.mxu0 0.0
      %301 = vmatprep.subr.mxu0 0.0
      %302 = vmatpush1.msra.mxu0 0.0
      %303 = vmatprep.mubr.f32.mxu0 0.0
      %304 = vmatmul.mubr.f32.gmra.mrb[0].mxu0 %v237
      %v305 = vpop.f32.mrb[0].mxu0
      %v306 = vadd.f32 0.0, %v305
      %v307 = vpop.f32.mrb[0].mxu0
      %308 = vdwg.mxu0
      %v309 = vadd.f32 %v233, %v306
      %v310 = vtanh.pop %v309
      %v311 = vmax.f32 %v310, 0.0
      %v313 = vsel %vm162, %v311, 0
      %315 = vmatprep.subr.mxu0 0.0
      %316 = vmatpush1.msra.mxu0 %v146
      %317 = vmatprep.subr.mxu0 0.0
      %318 = vmatpush1.msra.mxu0 %v147
      %319 = vmatprep.subr.mxu0 0.0
      %320 = vmatpush1.msra.mxu0 %v148
      %321 = vmatprep.subr.mxu0 0.0
      %322 = vmatpush1.msra.mxu0 %v149
      %323 = vmatprep.subr.mxu0 0.0
      %324 = vmatpush1.msra.mxu0 0.0
      %325 = vmatprep.subr.mxu0 0.0
      %326 = vmatpush1.msra.mxu0 0.0
      %327 = vmatprep.subr.mxu0 0.0
      %328 = vmatpush1.msra.mxu0 0.0
      %329 = vmatprep.subr.mxu0 0.0
      %330 = vmatpush1.msra.mxu0 0.0
      %331 = vmatprep.subr.mxu0 0.0
      %332 = vmatpush1.msra.mxu0 0.0
      %333 = vmatprep.subr.mxu0 0.0
      %334 = vmatpush1.msra.mxu0 0.0
      %335 = vmatprep.subr.mxu0 0.0
      %336 = vmatpush1.msra.mxu0 0.0
      %337 = vmatprep.subr.mxu0 0.0
      %338 = vmatpush1.msra.mxu0 0.0
      %339 = vmatprep.subr.mxu0 0.0
      %340 = vmatpush1.msra.mxu0 0.0
      %341 = vmatprep.subr.mxu0 0.0
      %342 = vmatpush1.msra.mxu0 0.0
      %343 = vmatprep.subr.mxu0 0.0
      %344 = vmatpush1.msra.mxu0 0.0
      %345 = vmatprep.subr.mxu0 0.0
      %346 = vmatpush1.msra.mxu0 0.0
      %347 = vmatprep.subr.mxu0 0.0
      %348 = vmatpush1.msra.mxu0 0.0
      %349 = vmatprep.subr.mxu0 0.0
      %350 = vmatpush1.msra.mxu0 0.0
      %351 = vmatprep.subr.mxu0 0.0
      %352 = vmatpush1.msra.mxu0 0.0
      %353 = vmatprep.subr.mxu0 0.0
      %354 = vmatpush1.msra.mxu0 0.0
      %355 = vmatprep.subr.mxu0 0.0
      %356 = vmatpush1.msra.mxu0 0.0
      %357 = vmatprep.subr.mxu0 0.0
      %358 = vmatpush1.msra.mxu0 0.0
      %359 = vmatprep.subr.mxu0 0.0
      %360 = vmatpush1.msra.mxu0 0.0
      %361 = vmatprep.subr.mxu0 0.0
      %362 = vmatpush1.msra.mxu0 0.0
      %363 = vmatprep.subr.mxu0 0.0
      %364 = vmatpush1.msra.mxu0 0.0
      %365 = vmatprep.subr.mxu0 0.0
      %366 = vmatpush1.msra.mxu0 0.0
      %367 = vmatprep.subr.mxu0 0.0
      %368 = vmatpush1.msra.mxu0 0.0
      %369 = vmatprep.subr.mxu0 0.0
      %370 = vmatpush1.msra.mxu0 0.0
      %371 = vmatprep.subr.mxu0 0.0
      %372 = vmatpush1.msra.mxu0 0.0
      %373 = vmatprep.subr.mxu0 0.0
      %374 = vmatpush1.msra.mxu0 0.0
      %375 = vmatprep.subr.mxu0 0.0
      %376 = vmatpush1.msra.mxu0 0.0
      %377 = vmatprep.subr.mxu0 0.0
      %378 = vmatpush1.msra.mxu0 0.0
      %379 = vmatprep.mubr.f32.mxu0 0.0
      %380 = vmatmul.mubr.f32.gmra.mrb[0].mxu0 %v313
      %v381 = vpop.f32.mrb[0].mxu0
      %v382 = vadd.f32 0.0, %v381
      %v383 = vpop.f32.mrb[0].mxu0
      %384 = vdwg.mxu0
      %v385 = vadd.f32 %v233, %v382
      %v386 = vtanh.pop %v385
      %v387 = vmax.f32 %v386, 0.0
      %v389 = vsel %vm162, %v387, 0
      %391 = vmatprep.subr.mxu0 0.0
      %392 = vmatpush1.msra.mxu0 %v146
      %393 = vmatprep.subr.mxu0 0.0
      %394 = vmatpush1.msra.mxu0 %v147
      %395 = vmatprep.subr.mxu0 0.0
      %396 = vmatpush1.msra.mxu0 %v148
      %397 = vmatprep.subr.mxu0 0.0
      %398 = vmatpush1.msra.mxu0 %v149
      %399 = vmatprep.subr.mxu0 0.0
      %400 = vmatpush1.msra.mxu0 0.0
      %401 = vmatprep.subr.mxu0 0.0
      %402 = vmatpush1.msra.mxu0 0.0
      %403 = vmatprep.subr.mxu0 0.0
      %404 = vmatpush1.msra.mxu0 0.0
      %405 = vmatprep.subr.mxu0 0.0
      %406 = vmatpush1.msra.mxu0 0.0
      %407 = vmatprep.subr.mxu0 0.0
      %408 = vmatpush1.msra.mxu0 0.0
      %409 = vmatprep.subr.mxu0 0.0
      %410 = vmatpush1.msra.mxu0 0.0
      %411 = vmatprep.subr.mxu0 0.0
      %412 = vmatpush1.msra.mxu0 0.0
      %413 = vmatprep.subr.mxu0 0.0
      %414 = vmatpush1.msra.mxu0 0.0
      %415 = vmatprep.subr.mxu0 0.0
      %416 = vmatpush1.msra.mxu0 0.0
      %417 = vmatprep.subr.mxu0 0.0
      %418 = vmatpush1.msra.mxu0 0.0
      %419 = vmatprep.subr.mxu0 0.0
      %420 = vmatpush1.msra.mxu0 0.0
      %421 = vmatprep.subr.mxu0 0.0
      %422 = vmatpush1.msra.mxu0 0.0
      %423 = vmatprep.subr.mxu0 0.0
      %424 = vmatpush1.msra.mxu0 0.0
      %425 = vmatprep.subr.mxu0 0.0
      %426 = vmatpush1.msra.mxu0 0.0
      %427 = vmatprep.subr.mxu0 0.0
      %428 = vmatpush1.msra.mxu0 0.0
      %429 = vmatprep.subr.mxu0 0.0
      %430 = vmatpush1.msra.mxu0 0.0
      %431 = vmatprep.subr.mxu0 0.0
      %432 = vmatpush1.msra.mxu0 0.0
      %433 = vmatprep.subr.mxu0 0.0
      %434 = vmatpush1.msra.mxu0 0.0
      %435 = vmatprep.subr.mxu0 0.0
      %436 = vmatpush1.msra.mxu0 0.0
      %437 = vmatprep.subr.mxu0 0.0
      %438 = vmatpush1.msra.mxu0 0.0
      %439 = vmatprep.subr.mxu0 0.0
      %440 = vmatpush1.msra.mxu0 0.0
      %441 = vmatprep.subr.mxu0 0.0
      %442 = vmatpush1.msra.mxu0 0.0
      %443 = vmatprep.subr.mxu0 0.0
      %444 = vmatpush1.msra.mxu0 0.0
      %445 = vmatprep.subr.mxu0 0.0
      %446 = vmatpush1.msra.mxu0 0.0
      %447 = vmatprep.subr.mxu0 0.0
      %448 = vmatpush1.msra.mxu0 0.0
      %449 = vmatprep.subr.mxu0 0.0
      %450 = vmatpush1.msra.mxu0 0.0
      %451 = vmatprep.subr.mxu0 0.0
      %452 = vmatpush1.msra.mxu0 0.0
      %453 = vmatprep.subr.mxu0 0.0
      %454 = vmatpush1.msra.mxu0 0.0
      %455 = vmatprep.mubr.f32.mxu0 0.0
      %456 = vmatmul.mubr.f32.gmra.mrb[0].mxu0 %v389
      %v457 = vpop.f32.mrb[0].mxu0
      %v458 = vadd.f32 0.0, %v457
      %v459 = vpop.f32.mrb[0].mxu0
      %460 = vdwg.mxu0
      %v461 = vadd.f32 %v233, %v458
      %v462 = vtanh.pop %v461
      %v463 = vmax.f32 %v462, 0.0
      %v465 = vsel %vm162, %v463, 0
      %467 = vmatprep.subr.mxu0 0.0
      %468 = vmatpush1.msra.mxu0 %v146
      %469 = vmatprep.subr.mxu0 0.0
      %470 = vmatpush1.msra.mxu0 %v147
      %471 = vmatprep.subr.mxu0 0.0
      %472 = vmatpush1.msra.mxu0 %v148
      %473 = vmatprep.subr.mxu0 0.0
      %474 = vmatpush1.msra.mxu0 %v149
      %475 = vmatprep.subr.mxu0 0.0
      %476 = vmatpush1.msra.mxu0 0.0
      %477 = vmatprep.subr.mxu0 0.0
      %478 = vmatpush1.msra.mxu0 0.0
      %479 = vmatprep.subr.mxu0 0.0
      %480 = vmatpush1.msra.mxu0 0.0
      %481 = vmatprep.subr.mxu0 0.0
      %482 = vmatpush1.msra.mxu0 0.0
      %483 = vmatprep.subr.mxu0 0.0
      %484 = vmatpush1.msra.mxu0 0.0
      %485 = vmatprep.subr.mxu0 0.0
      %486 = vmatpush1.msra.mxu0 0.0
      %487 = vmatprep.subr.mxu0 0.0
      %488 = vmatpush1.msra.mxu0 0.0
      %489 = vmatprep.subr.mxu0 0.0
      %490 = vmatpush1.msra.mxu0 0.0
      %491 = vmatprep.subr.mxu0 0.0
      %492 = vmatpush1.msra.mxu0 0.0
      %493 = vmatprep.subr.mxu0 0.0
      %494 = vmatpush1.msra.mxu0 0.0
      %495 = vmatprep.subr.mxu0 0.0
      %496 = vmatpush1.msra.mxu0 0.0
      %497 = vmatprep.subr.mxu0 0.0
      %498 = vmatpush1.msra.mxu0 0.0
      %499 = vmatprep.subr.mxu0 0.0
      %500 = vmatpush1.msra.mxu0 0.0
      %501 = vmatprep.subr.mxu0 0.0
      %502 = vmatpush1.msra.mxu0 0.0
      %503 = vmatprep.subr.mxu0 0.0
      %504 = vmatpush1.msra.mxu0 0.0
      %505 = vmatprep.subr.mxu0 0.0
      %506 = vmatpush1.msra.mxu0 0.0
      %507 = vmatprep.subr.mxu0 0.0
      %508 = vmatpush1.msra.mxu0 0.0
      %509 = vmatprep.subr.mxu0 0.0
      %510 = vmatpush1.msra.mxu0 0.0
      %511 = vmatprep.subr.mxu0 0.0
      %512 = vmatpush1.msra.mxu0 0.0
      %513 = vmatprep.subr.mxu0 0.0
      %514 = vmatpush1.msra.mxu0 0.0
      %515 = vmatprep.subr.mxu0 0.0
      %516 = vmatpush1.msra.mxu0 0.0
      %517 = vmatprep.subr.mxu0 0.0
      %518 = vmatpush1.msra.mxu0 0.0
      %519 = vmatprep.subr.mxu0 0.0
      %520 = vmatpush1.msra.mxu0 0.0
      %521 = vmatprep.subr.mxu0 0.0
      %522 = vmatpush1.msra.mxu0 0.0
      %523 = vmatprep.subr.mxu0 0.0
      %524 = vmatpush1.msra.mxu0 0.0
      %525 = vmatprep.subr.mxu0 0.0
      %526 = vmatpush1.msra.mxu0 0.0
      %527 = vmatprep.subr.mxu0 0.0
      %528 = vmatpush1.msra.mxu0 0.0
      %529 = vmatprep.subr.mxu0 0.0
      %530 = vmatpush1.msra.mxu0 0.0
      %531 = vmatprep.mubr.f32.mxu0 0.0
      %532 = vmatmul.mubr.f32.gmra.mrb[0].mxu0 %v465
      %v533 = vpop.f32.mrb[0].mxu0
      %v534 = vadd.f32 0.0, %v533
      %v535 = vpop.f32.mrb[0].mxu0
      %536 = vdwg.mxu0
      %v537 = vadd.f32 %v233, %v534
      %v538 = vtanh.pop %v537
      %v539 = vmax.f32 %v538, 0.0
      %v540 = vlaneseq
      %v541 = vshrl.u32 %v540, 7
      %v542 = vsub.s32 1, %v541
      %v543 = vrot.slane %v154, %v542
      %v545 = vsel %vm162, %v539, 0
      %547 = vmatprep.subr.mxu0 0.0
      %548 = vmatpush1.msra.mxu0 %v150
      %549 = vmatprep.subr.mxu0 0.0
      %550 = vmatpush1.msra.mxu0 %v151
      %551 = vmatprep.subr.mxu0 0.0
      %552 = vmatpush1.msra.mxu0 %v152
      %553 = vmatprep.subr.mxu0 0.0
      %554 = vmatpush1.msra.mxu0 %v153
      %555 = vmatprep.subr.mxu0 0.0
      %556 = vmatpush1.msra.mxu0 0.0
      %557 = vmatprep.subr.mxu0 0.0
      %558 = vmatpush1.msra.mxu0 0.0
      %559 = vmatprep.subr.mxu0 0.0
      %560 = vmatpush1.msra.mxu0 0.0
      %561 = vmatprep.subr.mxu0 0.0
      %562 = vmatpush1.msra.mxu0 0.0
      %563 = vmatprep.subr.mxu0 0.0
      %564 = vmatpush1.msra.mxu0 0.0
      %565 = vmatprep.subr.mxu0 0.0
      %566 = vmatpush1.msra.mxu0 0.0
      %567 = vmatprep.subr.mxu0 0.0
      %568 = vmatpush1.msra.mxu0 0.0
      %569 = vmatprep.subr.mxu0 0.0
      %570 = vmatpush1.msra.mxu0 0.0
      %571 = vmatprep.subr.mxu0 0.0
      %572 = vmatpush1.msra.mxu0 0.0
      %573 = vmatprep.subr.mxu0 0.0
      %574 = vmatpush1.msra.mxu0 0.0
      %575 = vmatprep.subr.mxu0 0.0
      %576 = vmatpush1.msra.mxu0 0.0
      %577 = vmatprep.subr.mxu0 0.0
      %578 = vmatpush1.msra.mxu0 0.0
      %579 = vmatprep.subr.mxu0 0.0
      %580 = vmatpush1.msra.mxu0 0.0
      %581 = vmatprep.subr.mxu0 0.0
      %582 = vmatpush1.msra.mxu0 0.0
      %583 = vmatprep.subr.mxu0 0.0
      %584 = vmatpush1.msra.mxu0 0.0
      %585 = vmatprep.subr.mxu0 0.0
      %586 = vmatpush1.msra.mxu0 0.0
      %587 = vmatprep.subr.mxu0 0.0
      %588 = vmatpush1.msra.mxu0 0.0
      %589 = vmatprep.subr.mxu0 0.0
      %590 = vmatpush1.msra.mxu0 0.0
      %591 = vmatprep.subr.mxu0 0.0
      %592 = vmatpush1.msra.mxu0 0.0
      %593 = vmatprep.subr.mxu0 0.0
      %594 = vmatpush1.msra.mxu0 0.0
      %595 = vmatprep.subr.mxu0 0.0
      %596 = vmatpush1.msra.mxu0 0.0
      %597 = vmatprep.subr.mxu0 0.0
      %598 = vmatpush1.msra.mxu0 0.0
      %599 = vmatprep.subr.mxu0 0.0
      %600 = vmatpush1.msra.mxu0 0.0
      %601 = vmatprep.subr.mxu0 0.0
      %602 = vmatpush1.msra.mxu0 0.0
      %603 = vmatprep.subr.mxu0 0.0
      %604 = vmatpush1.msra.mxu0 0.0
      %605 = vmatprep.subr.mxu0 0.0
      %606 = vmatpush1.msra.mxu0 0.0
      %607 = vmatprep.subr.mxu0 0.0
      %608 = vmatpush1.msra.mxu0 0.0
      %609 = vmatprep.subr.mxu0 0.0
      %610 = vmatpush1.msra.mxu0 0.0
      %611 = vmatprep.mubr.f32.mxu0 0.0
      %612 = vmatmul.mubr.f32.gmra.mrb[0].mxu0 %v545
      %v613 = vpop.f32.mrb[0].mxu0
      %v614 = vadd.f32 %v543, %v613
      %v615 = vpop.f32.mrb[0].mxu0
      %616 = vdwg.mxu0
      %vm617 = vcmask 44032
      %v618 = vsel %vm617, %v614, -inf
      %619 = vmax.xlane.f32.xlu0 %v618
      %v620 = vpop.xlane.xlu0 %619
      %v621 = vsub.f32 %v614, %v620
      %v622 = vmul.f32 %v621, 1.442695
      %v623 = vpow.pop %v622
      %v624 = vsel %vm617, %v623, 0.0
      %625 = vadd.xlane.f32.xlu0 %v624
      %v626 = vpop.xlane.xlu0 %625
      %v627 = vlog2.pop %v626
      %v628 = vmul.f32 %v627, 0.6931472
      %v629 = vsub.f32 %v621, %v628
      %630 = vst.msk [vmem:[%s141] sm:$0xf] %vm617, %v629
      %p631 = scmp.lt.s32.totalorder %s13, 7
      %s632 = scalar_select %p631, %s13, 7
      %s633 = smul.addr %s632, 4
      %s634 = scalar_lea.vmem %s2, %s633
      // Predicated region
      $region29: #{rnn_forward.1} parent=27 // pred_check
        %p635 = pneg %p78
      $region30: #{rnn_forward.1} parent=27 // pred_check_branch
        %637 = sbr.rel (%p635) target = $region32
      $region31: #{rnn_forward.1} parent=27 // pred_region
        _
      $region32: #{rnn_forward.1} parent=27 // pred_fallthru
        _
    $region28: #{rnn_forward.1} parent=5 // pred_fallthru
      _
    %p638 = scmp.le.s32.totalorder 2, %s8
    // Predicated region
    $region33: #{rnn_forward.1} parent=5 // pred_check
      %p639 = pneg %p638
    $region34: #{rnn_forward.1} parent=5 // pred_check_branch
      %641 = sbr.rel (%p639) target = $region36
    $region35: #{rnn_forward.1} parent=5 // pred_region
      %s642 = ssub.s32 %s8, 2
      // Predicated region
      $region37: #{rnn_forward.1} parent=35 // pred_check
        %p643 = pneg %p84
      $region38: #{rnn_forward.1} parent=35 // pred_check_branch
        %645 = sbr.rel (%p643) target = $region40
      $region39: #{rnn_forward.1} parent=35 // pred_region
        %p646 = scmp.lt.s32.totalorder %s14, 7
        %s647 = scalar_select %p646, %s14, 7
        %s648 = smul.addr %s647, 4
        %s649 = scalar_lea.vmem %s2, %s648
      $region40: #{rnn_forward.1} parent=35 // pred_fallthru
        _
    $region36: #{rnn_forward.1} parent=5 // pred_fallthru
      _
  $region6: #{rnn_forward.1} parent=0 // loop_footer
    %s12 = sadd.s32 1, %s8
  $region7: #{rnn_forward.1} parent=0 // loop_footer_branch
    %7 = sbr.rel target = $region3
  $region8: #{rnn_forward.1} parent=0 // loop_exit
    _

</llo_original>
